<compile_context>
chip_gen: v7x
topology: tpu7x:2x2x1
jax: 0.10.0
libtpu: 0.0.40
codegen_flags: <defaults>
</compile_context>

<pallas_src>
import functools

import jax
import jax.numpy as jnp
from jax.experimental import pallas as pl
from jax.experimental.pallas import tpu as pltpu


_MIN_TILES = 4  # target minimum grid length for large N (megacore + pipelining)


def _round_up(x, m):
    return ((x + m - 1) // m) * m


def _sublane_align(dtype):
    """Native sublane packing of the input dtype (rows per 32-bit sublane tile)."""
    itemsize = jnp.dtype(dtype).itemsize
    return {4: 8, 2: 16, 1: 32}.get(itemsize, 8)


def _gen_params():
    """(target elems per input block, vmem_limit_bytes) chosen per TPU generation."""
    try:
        info = pltpu.get_tpu_info()
        vmem = int(getattr(info, "vmem_capacity_bytes", 0))
    except Exception:  # pragma: no cover - conservative fallback off-TPU
        vmem = 0
    if vmem >= 100 * 1024 * 1024:
        # v5e / v6e: 128 MiB physical VMEM -> go big (4 MiB f32 per input block).
        return 1024 * 1024, 64 * 1024 * 1024
    # v7x (64 MiB physical / 32 MiB scoped) or unknown: stay conservative.
    return 512 * 1024, 32 * 1024 * 1024


def _pick_tile_n(n_rows, n_classes, align, target_elems):
    """Row-tile size: big enough to saturate HBM, small enough for >= _MIN_TILES."""
    rows = target_elems // max(1, n_classes)
    rows = max(align, (rows // align) * align)
    if n_rows >= _MIN_TILES * align:
        # Keep at least _MIN_TILES grid steps on large inputs so both v7x
        # TensorCores get work and the i+1 prefetch can overlap compute.
        cap = _round_up(-(-n_rows // _MIN_TILES), align)
        rows = min(rows, cap)
    n_pad = _round_up(n_rows, align)
    return max(align, min(rows, n_pad))


def _seqkd_kernel(pred_ref, refl_ref, out_ref, *, inv_T, start_idx, n_rows, tile_n):
    """One grid step: KL partial sum of a (tile_n, C) row tile -> (1, 1) scalar."""
    p = pred_ref[...].astype(jnp.float32)
    r = refl_ref[...].astype(jnp.float32)
    if inv_T != 1.0:                                   # static Python branch
        p = p * jnp.float32(inv_T)
        r = r * jnp.float32(inv_T)

    if start_idx > 0:
        # use_blank=False: mask the blank class with a large finite negative.
        # exp() underflows to exactly 0 for that lane, so it drops out of
        # every sum with no NaN cleanup pass (no -inf anywhere).
        lane = jax.lax.broadcasted_iota(jnp.int32, p.shape, 1)
        class_ok = lane >= start_idx
        sentinel = jnp.float32(-1e30)
        p = jnp.where(class_ok, p, sentinel)
        r = jnp.where(class_ok, r, sentinel)

    # log_softmax(pred / T) pieces
    p_shift = p - jnp.max(p, axis=-1, keepdims=True)
    p_lse = jnp.log(jnp.sum(jnp.exp(p_shift), axis=-1, keepdims=True))   # (tile_n, 1)

    # softmax(ref / T) pieces
    r_shift = r - jnp.max(r, axis=-1, keepdims=True)
    r_exp = jnp.exp(r_shift)
    r_sum = jnp.sum(r_exp, axis=-1, keepdims=True)                       # (tile_n, 1)

    # Fused KL:  sum_c softmax(r) * (log_softmax(r) - log_softmax(p))
    #          = sum_c r_exp*(r_shift - p_shift) / r_sum + (p_lse - log(r_sum))
    # Only one full-tile subtract + one full-tile multiply; the per-row log
    # terms are added after the lane reduction.
    diff_sum = jnp.sum(r_exp * (r_shift - p_shift), axis=-1, keepdims=True)
    row_kl = (diff_sum * pl.reciprocal(r_sum, approx=False)
              + (p_lse - jnp.log(r_sum)))                                # (tile_n, 1)

    if (n_rows % tile_n) != 0:
        # Ragged last tile: the block read extends past the logical end of the
        # (N, C) arrays, so padded rows may contain arbitrary (even NaN/Inf)
        # data.  Rows are computed independently, so garbage rows cannot
        # poison valid ones; this mask MUST stay *after* the full row_kl
        # computation so jnp.where simply discards them.
        row = jax.lax.broadcasted_iota(jnp.int32, row_kl.shape, 0)
        row_ok = (pl.program_id(0) * tile_n + row) < n_rows
        row_kl = jnp.where(row_ok, row_kl, 0.0)

    out_ref[...] = jnp.sum(row_kl, axis=0, keepdims=True)                # (1, 1)


def seqkd_loss(prediction_logits, ref_logits, *, T=1.0, use_blank=True, tile_n=None):
    """Pallas implementation of SeqKD.forward (forward value only)."""
    start_idx = 0 if use_blank else 1
    B, S, C = prediction_logits.shape
    N = B * S

    # Full arrays stream straight from HBM: no class slicing, no dtype cast
    # (both would add a full HBM pass). Contiguous reshape is free.
    p2 = prediction_logits.reshape(N, C)
    r2 = ref_logits.reshape(N, C)

    align = max(_sublane_align(prediction_logits.dtype),
                _sublane_align(ref_logits.dtype))
    target_elems, vmem_limit = _gen_params()

    if tile_n is None:
        tile_n = _pick_tile_n(N, C, align, target_elems)
    tile_n = max(align, (int(tile_n) // align) * align)
    num_tiles = -(-N // tile_n)

    # TODO(synk): for very large vocabularies (C >~ 64K on v7x) add an
    # online-softmax class-axis tiling so VMEM stays flat; with the current
    # scheme the row tile simply shrinks toward `align` rows (still correct).

    kernel = functools.partial(
        _seqkd_kernel,
        inv_T=1.0 / float(T),
        start_idx=start_idx,
        n_rows=N,
        tile_n=tile_n,
    )

    partials = pl.pallas_call(
        kernel,
        out_shape=jax.ShapeDtypeStruct((num_tiles, 1), jnp.float32),
        grid_spec=pltpu.PrefetchScalarGridSpec(
            num_scalar_prefetch=0,
            grid=(num_tiles,),
            in_specs=[
                pl.BlockSpec((tile_n, C), lambda i: (i, 0)),
                pl.BlockSpec((tile_n, C), lambda i: (i, 0)),
            ],
            out_specs=pl.BlockSpec((1, 1), lambda i: (i, 0)),
        ),
        compiler_params=pltpu.CompilerParams(
            dimension_semantics=("parallel",),          # independent per-tile partials
            vmem_limit_bytes=vmem_limit,
        ),
    )(p2, r2)

    # batchmean over B*S rows, times T^2; cross-tile sum kept outside the kernel
    # so the grid axis stays parallel and partials are summed in f32.
    scale = (float(T) * float(T)) / float(N)
    return jnp.sum(partials) * scale


def _seqkd_reference(prediction_logits, ref_logits, *, T=1.0, use_blank=True):
    """Pure-JAX reference mirroring the PyTorch module."""
    start_idx = 0 if use_blank else 1
    C = ref_logits.shape[2] - start_idx
    log_q = jax.nn.log_softmax(prediction_logits[:, :, start_idx:] / T,
                               axis=-1).reshape(-1, C)
    ref_p = jax.nn.softmax(ref_logits[:, :, start_idx:] / T,
                           axis=-1).reshape(-1, C)
    kl = jnp.sum(ref_p * (jnp.log(ref_p) - log_q)) / log_q.shape[0]
    return kl * T * T


if __name__ == "__main__":
    # SeqKD has no learnable parameters (T is a hyper-parameter).
    key = jax.random.PRNGKey(0)
    k1, k2, k3, k4 = jax.random.split(key, 4)

    # Case 1: canonical small shape, use_blank=True, auto tile (single grid step).
    B, S, C = 2, 8, 32
    pred = jax.random.normal(k1, (B, S, C), dtype=jnp.float32)
    refl = jax.random.normal(k2, (B, S, C), dtype=jnp.float32)
    out1 = jax.block_until_ready(seqkd_loss(pred, refl, T=1.0, use_blank=True))
    ref1 = _seqkd_reference(pred, refl, T=1.0, use_blank=True)
    assert jnp.allclose(out1, ref1, atol=1e-5, rtol=1e-5), (out1, ref1)

    # Case 2: use_blank=False (finite-sentinel class-0 mask), multi-tile, T != 1.
    out2 = jax.block_until_ready(
        seqkd_loss(pred, refl, T=2.0, use_blank=False, tile_n=8))
    ref2 = _seqkd_reference(pred, refl, T=2.0, use_blank=False)
    assert jnp.allclose(out2, ref2, atol=1e-5, rtol=1e-5), (out2, ref2)

    # Case 3: ragged row count (N=15, not a multiple of tile_n) -> masked last tile.
    B3, S3 = 3, 5
    pred3 = jax.random.normal(k3, (B3, S3, C), dtype=jnp.float32)
    refl3 = jax.random.normal(k4, (B3, S3, C), dtype=jnp.float32)
    out3 = jax.block_until_ready(
        seqkd_loss(pred3, refl3, T=1.0, use_blank=True, tile_n=8))
    ref3 = _seqkd_reference(pred3, refl3, T=1.0, use_blank=True)
    assert jnp.allclose(out3, ref3, atol=1e-5, rtol=1e-5), (out3, ref3)

    # Case 4: bf16 inputs (16-row sublane alignment path), upcast in VMEM.
    pred4 = pred.astype(jnp.bfloat16)
    refl4 = refl.astype(jnp.bfloat16)
    out4 = jax.block_until_ready(seqkd_loss(pred4, refl4, T=1.0, use_blank=True))
    ref4 = _seqkd_reference(pred4.astype(jnp.float32), refl4.astype(jnp.float32),
                            T=1.0, use_blank=True)
    assert jnp.allclose(out4, ref4, atol=2e-2, rtol=2e-2), (out4, ref4)

    print("KERNEL_OK")
</pallas_src>

<mosaic_0001>
module attributes {stable_mosaic.version = 11 : i64} {
  func.func @_seqkd_kernel(%arg0: i32, %arg1: memref<16x32xf32, #tpu.memory_space<vmem>>, %arg2: memref<16x32xf32, #tpu.memory_space<vmem>>, %arg3: memref<1x1xf32, #tpu.memory_space<vmem>>) attributes {dimension_semantics = [#tpu.dimension_semantics<parallel>], iteration_bounds = array<i64: 1>, scalar_prefetch = 0 : i64, scratch_operands = 0 : i64, tpu.core_type = #tpu.core_type<tc>, window_params = [{transform_indices = @transform_0, window_bounds = array<i64: 16, 32>}, {transform_indices = @transform_1, window_bounds = array<i64: 16, 32>}, {transform_indices = @transform_2, window_bounds = array<i64: 1, 1>}]} {
    %c0 = arith.constant 0 : index
    %c0_0 = arith.constant 0 : index
    %0 = vector.load %arg1[%c0, %c0_0] : memref<16x32xf32, #tpu.memory_space<vmem>>, vector<16x32xf32>
    %c0_1 = arith.constant 0 : index
    %c0_2 = arith.constant 0 : index
    %1 = vector.load %arg2[%c0_1, %c0_2] : memref<16x32xf32, #tpu.memory_space<vmem>>, vector<16x32xf32>
    %cst = arith.constant dense<0xFF800000> : vector<16xf32>
    %2 = vector.multi_reduction <maximumf>, %0, %cst [1] : vector<16x32xf32> to vector<16xf32>
    %3 = vector.shape_cast %2 : vector<16xf32> to vector<16x1xf32>
    %4 = vector.broadcast %3 : vector<16x1xf32> to vector<16x32xf32>
    %5 = arith.subf %0, %4 : vector<16x32xf32>
    %6 = math.exp %5 : vector<16x32xf32>
    %cst_3 = arith.constant dense<0.000000e+00> : vector<16xf32>
    %7 = vector.multi_reduction <add>, %6, %cst_3 [1] : vector<16x32xf32> to vector<16xf32>
    %8 = vector.shape_cast %7 : vector<16xf32> to vector<16x1xf32>
    %9 = math.log %8 : vector<16x1xf32>
    %cst_4 = arith.constant dense<0xFF800000> : vector<16xf32>
    %10 = vector.multi_reduction <maximumf>, %1, %cst_4 [1] : vector<16x32xf32> to vector<16xf32>
    %11 = vector.shape_cast %10 : vector<16xf32> to vector<16x1xf32>
    %12 = vector.broadcast %11 : vector<16x1xf32> to vector<16x32xf32>
    %13 = arith.subf %1, %12 : vector<16x32xf32>
    %14 = math.exp %13 : vector<16x32xf32>
    %cst_5 = arith.constant dense<0.000000e+00> : vector<16xf32>
    %15 = vector.multi_reduction <add>, %14, %cst_5 [1] : vector<16x32xf32> to vector<16xf32>
    %16 = vector.shape_cast %15 : vector<16xf32> to vector<16x1xf32>
    %17 = arith.subf %13, %5 : vector<16x32xf32>
    %18 = arith.mulf %14, %17 : vector<16x32xf32>
    %cst_6 = arith.constant dense<0.000000e+00> : vector<16xf32>
    %19 = vector.multi_reduction <add>, %18, %cst_6 [1] : vector<16x32xf32> to vector<16xf32>
    %20 = vector.shape_cast %19 : vector<16xf32> to vector<16x1xf32>
    %21 = tpu.reciprocal %16 : vector<16x1xf32> -> vector<16x1xf32>
    %22 = arith.mulf %20, %21 : vector<16x1xf32>
    %23 = math.log %16 : vector<16x1xf32>
    %24 = arith.subf %9, %23 : vector<16x1xf32>
    %25 = arith.addf %22, %24 : vector<16x1xf32>
    %cst_7 = arith.constant dense<0.000000e+00> : vector<1xf32>
    %26 = vector.multi_reduction <add>, %25, %cst_7 [0] : vector<16x1xf32> to vector<1xf32>
    %27 = vector.shape_cast %26 : vector<1xf32> to vector<1x1xf32>
    %c0_8 = arith.constant 0 : index
    %c0_9 = arith.constant 0 : index
    %28 = vector.load %arg3[%c0_8, %c0_9] : memref<1x1xf32, #tpu.memory_space<vmem>>, vector<1x1xf32>
    tpu.vector_store %arg3[%c0_8, %c0_9], %27 {strides = array<i32>} : memref<1x1xf32, #tpu.memory_space<vmem>>, vector<1x1xf32>,
    return
  }
  func.func @transform_0(%arg0: i32) -> (i32, i32) {
    %c0_i32 = arith.constant 0 : i32
    %c0_i32_0 = arith.constant 0 : i32
    return %arg0, %c0_i32 : i32, i32
  }
  func.func @transform_1(%arg0: i32) -> (i32, i32) {
    %c0_i32 = arith.constant 0 : i32
    %c0_i32_0 = arith.constant 0 : i32
    return %arg0, %c0_i32 : i32, i32
  }
  func.func @transform_2(%arg0: i32) -> (i32, i32) {
    %c0_i32 = arith.constant 0 : i32
    %c0_i32_0 = arith.constant 0 : i32
    return %arg0, %c0_i32 : i32, i32
  }
}

</mosaic_0001>

<llo_original>
// kernel: tpu_custom_call.1
$region0: #{tpu_custom_call.1}
  #allocation0 [shape = 'u32[]', space=smem, size = 0x4, offset = 0x4, fixed_abs, tag = 'smem constant byte address 0x4 - core index']
  #allocation1 [shape = 'u32[144,128]{1,0:T(1,128)}', space=vmem, size = 0x12000, scoped, tag = 'internal scratch']
  %s0 = inlined_call_operand.hbm [shape: f32[16,32], index: 0, kind: input, shape index: {}]
  %s1 = inlined_call_operand.hbm [shape: f32[16,32], index: 1, kind: input, shape index: {}]
  %s2 = inlined_call_operand.hbm [shape: f32[1,1], index: 2, kind: output, shape index: {}]
  %s3 = sld [smem:[#allocation0]]
  $region26: #{tpu_custom_call.1} parent=0
    _
  %s5 = ssub.s32 1, %s3
  %s6 = scalar_select 0, %s5, %s3
  $region1: #{tpu_custom_call.1} parent=0
    #allocation2 [shape = 'u8[8192]{0}', space=vmem, size = 0x2000, scoped, tag = 'input window, operand 0, single buffered']
    #allocation3 [shape = 's32[1]{0}', space=sflag, size = 0x4, scoped, tag = 'scoped memory for tpu_custom_call.1']
    #allocation4 [shape = 's32[1]{0}', space=sflag, size = 0x4, scoped, tag = 'scoped memory for tpu_custom_call.1']
    #allocation5 [shape = 'u8[8192]{0}', space=vmem, size = 0x2000, scoped, tag = 'input window, operand 1, single buffered']
    #allocation6 [shape = 's32[1]{0}', space=sflag, size = 0x4, scoped, tag = 'scoped memory for tpu_custom_call.1']
    #allocation7 [shape = 'u8[512]{0}', space=vmem, size = 0x400, scoped, tag = 'output window, operand 0, single buffered']
    %7 = vsyncpa [#allocation3], 0
    %8 = vsyncpa [#allocation6], 0
    %9 = vsyncpa [#allocation4], 0
    // Predicated region
    $region2: #{tpu_custom_call.1} parent=1 // pred_check
      _
    $region3: #{tpu_custom_call.1} parent=1 // pred_check_branch
      %11 = sbr.rel (0) target = $region5
    $region4: #{tpu_custom_call.1} parent=1 // pred_region
      %s13 = ssub.s32 256, 256
      %14 = vsyncadd [#allocation3], %s13
      %s15 = sshll.u32 [#allocation2], 4
      %s16 = int_to_ptr.vmem [resolvable:$true] %s15
      %21 = dma.hbm_to_vmem [thread:$0]  %s0, 256, %s16, [#allocation3], 128, 128, 8
    $region5: #{tpu_custom_call.1} parent=1 // pred_fallthru
      _
    // Predicated region
    $region6: #{tpu_custom_call.1} parent=1 // pred_check
      _
    $region7: #{tpu_custom_call.1} parent=1 // pred_check_branch
      %23 = sbr.rel (0) target = $region9
    $region8: #{tpu_custom_call.1} parent=1 // pred_region
      %s25 = ssub.s32 256, 256
      %26 = vsyncadd [#allocation6], %s25
      %s27 = sshll.u32 [#allocation5], 4
      %s28 = int_to_ptr.vmem [resolvable:$true] %s27
      %33 = dma.hbm_to_vmem [thread:$0]  %s1, 256, %s28, [#allocation6], 128, 128, 8
    $region9: #{tpu_custom_call.1} parent=1 // pred_fallthru
      _
    // Predicated region
    $region10: #{tpu_custom_call.1} parent=1 // pred_check
      _
    $region11: #{tpu_custom_call.1} parent=1 // pred_check_branch
      %35 = sbr.rel (0) target = $region13
    $region12: #{tpu_custom_call.1} parent=1 // pred_region
      %36 = dma.done [#allocation3], 256
    $region13: #{tpu_custom_call.1} parent=1 // pred_fallthru
      _
    // Predicated region
    $region14: #{tpu_custom_call.1} parent=1 // pred_check
      _
    $region15: #{tpu_custom_call.1} parent=1 // pred_check_branch
      %38 = sbr.rel (0) target = $region17
    $region16: #{tpu_custom_call.1} parent=1 // pred_region
      %39 = dma.done [#allocation6], 256
    $region17: #{tpu_custom_call.1} parent=1 // pred_fallthru
      _
    %v40 = vld [vmem:[#allocation2] sm:$0xff]
    %v41 = vld [vmem:[#allocation2 + $0x8] sm:$0xff]
    %v42 = vld [vmem:[#allocation5] sm:$0xff]
    %v43 = vld [vmem:[#allocation5 + $0x8] sm:$0xff]
    %vm44 = vcmask 261120
    %v45 = vsel %vm44, %v40, -inf
    %46 = vmax.xlane.f32.xlu0 %v45
    %v47 = vpop.xlane.xlu0 %46
    %v48 = vsel %vm44, %v41, -inf
    %49 = vmax.xlane.f32.xlu0 %v48
    %v50 = vpop.xlane.xlu0 %49
    %v51 = vsub.f32 %v40, %v47
    %v52 = vsub.f32 %v41, %v50
    %v53 = vmul.f32 %v51, 1.442695
    %v54 = vpow.pop %v53
    %v55 = vmul.f32 %v52, 1.442695
    %v56 = vpow.pop %v55
    %v57 = vsel %vm44, %v54, 0.0
    %58 = vadd.xlane.f32.xlu0 %v57
    %v59 = vpop.xlane.xlu0 %58
    %v60 = vsel %vm44, %v56, 0.0
    %61 = vadd.xlane.f32.xlu0 %v60
    %v62 = vpop.xlane.xlu0 %61
    %v63 = vlog2.pop %v59
    %v64 = vmul.f32 %v63, 0.6931472
    %v65 = vlog2.pop %v62
    %v66 = vmul.f32 %v65, 0.6931472
    %v67 = vsel %vm44, %v42, -inf
    %68 = vmax.xlane.f32.xlu0 %v67
    %v69 = vpop.xlane.xlu0 %68
    %v70 = vsel %vm44, %v43, -inf
    %71 = vmax.xlane.f32.xlu0 %v70
    %v72 = vpop.xlane.xlu0 %71
    %v73 = vsub.f32 %v42, %v69
    %v74 = vsub.f32 %v43, %v72
    %v75 = vmul.f32 %v73, 1.442695
    %v76 = vpow.pop %v75
    %v77 = vmul.f32 %v74, 1.442695
    %v78 = vpow.pop %v77
    %v79 = vsel %vm44, %v76, 0.0
    %80 = vadd.xlane.f32.xlu0 %v79
    %v81 = vpop.xlane.xlu0 %80
    %v82 = vsel %vm44, %v78, 0.0
    %83 = vadd.xlane.f32.xlu0 %v82
    %v84 = vpop.xlane.xlu0 %83
    %v85 = vsub.f32 %v73, %v51
    %v86 = vsub.f32 %v74, %v52
    %v87 = vmul.f32 %v76, %v85
    %v88 = vmul.f32 %v78, %v86
    %v89 = vsel %vm44, %v87, 0.0
    %90 = vadd.xlane.f32.xlu0 %v89
    %v91 = vpop.xlane.xlu0 %90
    %v92 = vsel %vm44, %v88, 0.0
    %93 = vadd.xlane.f32.xlu0 %v92
    %v94 = vpop.xlane.xlu0 %93
    %v95 = vrcp.pop %v81
    %v96 = vrcp.pop %v84
    %v97 = vmul.f32 %v91, %v95
    %v98 = vmul.f32 %v94, %v96
    %v99 = vlog2.pop %v81
    %v100 = vmul.f32 %v99, 0.6931472
    %v101 = vlog2.pop %v84
    %v102 = vmul.f32 %v101, 0.6931472
    %v103 = vsub.f32 %v64, %v100
    %v104 = vsub.f32 %v66, %v102
    %v105 = vadd.f32 %v97, %v103
    %v106 = vadd.f32 %v98, %v104
    %v107 = vadd.f32 %v105, %v106
    %v108 = vrot.slane %v107, 4
    %v109 = vadd.f32 %v107, %v108
    %v110 = vrot.slane %v109, 2
    %v111 = vadd.f32 %v109, %v110
    %v112 = vrot.slane %v111, 1
    %v113 = vadd.f32 %v111, %v112
    %vm114 = vcmask 0
    %115 = vst.msk [vmem:[#allocation7] sm:$0x1] %vm114, %v113
    // Predicated region
    $region18: #{tpu_custom_call.1} parent=1 // pred_check
      _
    $region19: #{tpu_custom_call.1} parent=1 // pred_check_branch
      %117 = sbr.rel (0) target = $region21
    $region20: #{tpu_custom_call.1} parent=1 // pred_region
      %s119 = ssub.s32 16, 16
      %120 = vsyncadd [#allocation4], %s119
      %s122 = sshll.u32 [#allocation7], 4
      %s123 = int_to_ptr.vmem [resolvable:$true] %s122
      %125 = dma.vmem_to_hbm [thread:$0]  %s123, 16, %s2, [#allocation4]
    $region21: #{tpu_custom_call.1} parent=1 // pred_fallthru
      _
    // Predicated region
    $region22: #{tpu_custom_call.1} parent=1 // pred_check
      _
    $region23: #{tpu_custom_call.1} parent=1 // pred_check_branch
      %127 = sbr.rel (0) target = $region25
    $region24: #{tpu_custom_call.1} parent=1 // pred_region
      %128 = dma.done [#allocation4], 16
    $region25: #{tpu_custom_call.1} parent=1 // pred_fallthru
      _
    %129 = vsyncpa [#allocation3], 1
    %130 = vsyncpa [#allocation6], 1
    %131 = vsyncpa [#allocation4], 1

</llo_original>
